<compile_context>
chip_gen: v5e
topology: v5e:2x2
jax: 0.10.0
libtpu: 0.0.40
codegen_flags: <defaults>
</compile_context>

<pallas_src>
import jax
import jax.numpy as jnp
from jax.experimental import pallas as pl
from jax.experimental.pallas import tpu as pltpu


def _round_up(n, m):
    return -(-n // m) * m


def sae_kernel(x_ref, w1_ref, b1_ref, w2_ref, b2_ref, w3_ref, b3_ref,
               w4_ref, b4_ref, o_ref):
    # Entire 4-layer MLP fused in one kernel invocation per batch tile.
    x = x_ref[...]
    h = jax.nn.sigmoid(
        jnp.dot(x, w1_ref[...], preferred_element_type=jnp.float32) + b1_ref[...])
    h = jax.nn.sigmoid(
        jnp.dot(h, w2_ref[...], preferred_element_type=jnp.float32) + b2_ref[...])
    h = jax.nn.sigmoid(
        jnp.dot(h, w3_ref[...], preferred_element_type=jnp.float32) + b3_ref[...])
    out = jnp.dot(h, w4_ref[...], preferred_element_type=jnp.float32) + b4_ref[...]
    o_ref[...] = out.astype(o_ref.dtype)


def sae_forward(x, params, *, batch_tile=512):
    """x: (B, nb_movies) float32.  params: dict of transposed weights/biases.

    batch_tile: rows per grid step (multiple of 8).  Large tiles amortize the
    ~600-cycle per-step overhead and keep DMAs near the HBM roofline.  On v7x
    (64 MiB VMEM) keep batch_tile <= ~512 for very large nb_movies.
    """
    B, N = x.shape
    w1, b1 = params["w1"], params["b1"]   # (N, 20),  (1, 20)
    w2, b2 = params["w2"], params["b2"]   # (20, 10), (1, 10)
    w3, b3 = params["w3"], params["b3"]   # (10, 20), (1, 20)
    w4, b4 = params["w4"], params["b4"]   # (20, N),  (1, N)

    # --- Lane-dense feature axis: pad nb_movies to a multiple of 128. -------
    Npad = _round_up(N, 128)
    if Npad != N:
        pad_f = Npad - N
        x = jnp.pad(x, ((0, 0), (0, pad_f)))          # extra input cols = 0
        w1 = jnp.pad(w1, ((0, pad_f), (0, 0)))        # extra fc1 rows   = 0
        w4 = jnp.pad(w4, ((0, 0), (0, pad_f)))        # extra fc4 cols   = 0
        b4 = jnp.pad(b4, ((0, 0), (0, pad_f)))        # extra fc4 bias   = 0

    # --- Batch tiling: large tiles, multiple of 8, pad batch if needed. -----
    tile_b = min(batch_tile, _round_up(B, 8))
    assert tile_b % 8 == 0, "batch_tile must be a multiple of 8"
    Bpad = _round_up(B, tile_b)
    if Bpad != B:
        x = jnp.pad(x, ((0, Bpad - B), (0, 0)))

    grid = (Bpad // tile_b,)

    def full_spec(shape):
        # Whole-array block with a constant index_map: stays VMEM-resident
        # across grid steps (weights/biases are grid-invariant).
        return pl.BlockSpec(shape, lambda i: tuple(0 for _ in shape))

    # --- Explicit VMEM budget: 2 buffers x (in + out tile) + weights + slack.
    dsize = jnp.dtype(x.dtype).itemsize
    act_bytes = 2 * 2 * tile_b * Npad * dsize
    weight_bytes = 2 * sum(
        a.size * jnp.dtype(a.dtype).itemsize
        for a in (w1, b1, w2, b2, w3, b3, w4, b4))
    vmem_limit = int(min(act_bytes + weight_bytes + (8 << 20), 128 << 20))

    out = pl.pallas_call(
        sae_kernel,
        out_shape=jax.ShapeDtypeStruct((Bpad, Npad), x.dtype),
        grid_spec=pltpu.PrefetchScalarGridSpec(
            num_scalar_prefetch=0,
            grid=grid,
            in_specs=[
                pl.BlockSpec((tile_b, Npad), lambda i: (i, 0)),  # x
                full_spec(w1.shape), full_spec(b1.shape),
                full_spec(w2.shape), full_spec(b2.shape),
                full_spec(w3.shape), full_spec(b3.shape),
                full_spec(w4.shape), full_spec(b4.shape),
            ],
            out_specs=pl.BlockSpec((tile_b, Npad), lambda i: (i, 0)),
        ),
        compiler_params=pltpu.CompilerParams(
            dimension_semantics=("parallel",),   # shards grid over 2 TCs on v7x
            vmem_limit_bytes=vmem_limit),
    )(x, w1, b1, w2, b2, w3, b3, w4, b4)

    # Slice off batch / feature padding.
    return out[:B, :N]


def init_sae_params(key, nb_movies):
    """Deterministic init mimicking nn.Linear default (U[-1/sqrt(fan_in), +])."""
    dims = [(nb_movies, 20), (20, 10), (10, 20), (20, nb_movies)]
    params = {}
    for idx, (fan_in, fan_out) in enumerate(dims, start=1):
        key, kw, kb = jax.random.split(key, 3)
        bound = 1.0 / jnp.sqrt(jnp.float32(fan_in))
        # Stored already transposed: (in_features, out_features).
        params[f"w{idx}"] = jax.random.uniform(
            kw, (fan_in, fan_out), jnp.float32, -bound, bound)
        params[f"b{idx}"] = jax.random.uniform(
            kb, (1, fan_out), jnp.float32, -bound, bound)
    return params


def sae_reference(x, p):
    h = jax.nn.sigmoid(x @ p["w1"] + p["b1"])
    h = jax.nn.sigmoid(h @ p["w2"] + p["b2"])
    h = jax.nn.sigmoid(h @ p["w3"] + p["b3"])
    return h @ p["w4"] + p["b4"]


if __name__ == "__main__":
    # Small synthetic stand-in for the MovieLens movie count.  Deliberately
    # NOT a multiple of 128 to exercise the lane-dense padding path, and a
    # batch that gives >= 2 grid steps with the chosen tile.
    nb_movies = 200
    batch = 64

    key = jax.random.PRNGKey(0)
    key, kx = jax.random.split(key)
    # Ratings in [0, 5], many zeros like the original sparse rating matrix.
    x = jax.random.uniform(kx, (batch, nb_movies), jnp.float32, 0.0, 5.0)

    params = init_sae_params(jax.random.PRNGKey(0), nb_movies)

    # batch_tile=32 keeps the test small while exercising a multi-step grid;
    # production use would leave the 512-row default.
    out = sae_forward(x, params, batch_tile=32)
    out = jax.block_until_ready(out)

    ref = sae_reference(x, params)
    assert out.shape == (batch, nb_movies)
    assert jnp.allclose(out, ref, atol=1e-5, rtol=1e-5)

    print("KERNEL_OK")
</pallas_src>

<mosaic_0001>
module attributes {stable_mosaic.version = 11 : i64} {
  func.func @sae_kernel(%arg0: i32, %arg1: memref<32x256xf32, #tpu.memory_space<vmem>>, %arg2: memref<256x20xf32, #tpu.memory_space<vmem>>, %arg3: memref<1x20xf32, #tpu.memory_space<vmem>>, %arg4: memref<20x10xf32, #tpu.memory_space<vmem>>, %arg5: memref<1x10xf32, #tpu.memory_space<vmem>>, %arg6: memref<10x20xf32, #tpu.memory_space<vmem>>, %arg7: memref<1x20xf32, #tpu.memory_space<vmem>>, %arg8: memref<20x256xf32, #tpu.memory_space<vmem>>, %arg9: memref<1x256xf32, #tpu.memory_space<vmem>>, %arg10: memref<32x256xf32, #tpu.memory_space<vmem>>) attributes {dimension_semantics = [#tpu.dimension_semantics<parallel>], iteration_bounds = array<i64: 2>, scalar_prefetch = 0 : i64, scratch_operands = 0 : i64, tpu.core_type = #tpu.core_type<tc>, window_params = [{transform_indices = @transform_0, window_bounds = array<i64: 32, 256>}, {pipeline_mode = #tpu.pipeline_mode<synchronous>, transform_indices = @transform_1, window_bounds = array<i64: 256, 20>}, {pipeline_mode = #tpu.pipeline_mode<synchronous>, transform_indices = @transform_2, window_bounds = array<i64: 1, 20>}, {pipeline_mode = #tpu.pipeline_mode<synchronous>, transform_indices = @transform_3, window_bounds = array<i64: 20, 10>}, {pipeline_mode = #tpu.pipeline_mode<synchronous>, transform_indices = @transform_4, window_bounds = array<i64: 1, 10>}, {pipeline_mode = #tpu.pipeline_mode<synchronous>, transform_indices = @transform_5, window_bounds = array<i64: 10, 20>}, {pipeline_mode = #tpu.pipeline_mode<synchronous>, transform_indices = @transform_6, window_bounds = array<i64: 1, 20>}, {pipeline_mode = #tpu.pipeline_mode<synchronous>, transform_indices = @transform_7, window_bounds = array<i64: 20, 256>}, {pipeline_mode = #tpu.pipeline_mode<synchronous>, transform_indices = @transform_8, window_bounds = array<i64: 1, 256>}, {transform_indices = @transform_9, window_bounds = array<i64: 32, 256>}]} {
    %c0 = arith.constant 0 : index
    %c0_0 = arith.constant 0 : index
    %0 = vector.load %arg1[%c0, %c0_0] : memref<32x256xf32, #tpu.memory_space<vmem>>, vector<32x256xf32>
    %c0_1 = arith.constant 0 : index
    %c0_2 = arith.constant 0 : index
    %1 = vector.load %arg2[%c0_1, %c0_2] : memref<256x20xf32, #tpu.memory_space<vmem>>, vector<256x20xf32>
    %cst = arith.constant dense<0.000000e+00> : vector<32x20xf32>
    %2 = tpu.matmul %0, %1, %cst {dimension_numbers = #tpu.dot_dimension_numbers<[1], [0], [0], [1], [0, 0, 1, 1], [], []>} : vector<32x256xf32>, vector<256x20xf32>, vector<32x20xf32> -> vector<32x20xf32>
    %c0_3 = arith.constant 0 : index
    %c0_4 = arith.constant 0 : index
    %3 = vector.load %arg3[%c0_3, %c0_4] : memref<1x20xf32, #tpu.memory_space<vmem>>, vector<1x20xf32>
    %4 = vector.broadcast %3 : vector<1x20xf32> to vector<32x20xf32>
    %5 = arith.addf %2, %4 : vector<32x20xf32>
    %6 = arith.negf %5 : vector<32x20xf32>
    %7 = math.exp %6 : vector<32x20xf32>
    %cst_5 = arith.constant 1.000000e+00 : f32
    %8 = vector.broadcast %cst_5 : f32 to vector<32x20xf32>
    %9 = arith.addf %8, %7 : vector<32x20xf32>
    %10 = arith.divf %8, %9 : vector<32x20xf32>
    %c0_6 = arith.constant 0 : index
    %c0_7 = arith.constant 0 : index
    %11 = vector.load %arg4[%c0_6, %c0_7] : memref<20x10xf32, #tpu.memory_space<vmem>>, vector<20x10xf32>
    %cst_8 = arith.constant dense<0.000000e+00> : vector<32x10xf32>
    %12 = tpu.matmul %10, %11, %cst_8 {dimension_numbers = #tpu.dot_dimension_numbers<[1], [0], [0], [1], [0, 0, 1, 1], [], []>} : vector<32x20xf32>, vector<20x10xf32>, vector<32x10xf32> -> vector<32x10xf32>
    %c0_9 = arith.constant 0 : index
    %c0_10 = arith.constant 0 : index
    %13 = vector.load %arg5[%c0_9, %c0_10] : memref<1x10xf32, #tpu.memory_space<vmem>>, vector<1x10xf32>
    %14 = vector.broadcast %13 : vector<1x10xf32> to vector<32x10xf32>
    %15 = arith.addf %12, %14 : vector<32x10xf32>
    %16 = arith.negf %15 : vector<32x10xf32>
    %17 = math.exp %16 : vector<32x10xf32>
    %cst_11 = arith.constant 1.000000e+00 : f32
    %18 = vector.broadcast %cst_11 : f32 to vector<32x10xf32>
    %19 = arith.addf %18, %17 : vector<32x10xf32>
    %20 = arith.divf %18, %19 : vector<32x10xf32>
    %c0_12 = arith.constant 0 : index
    %c0_13 = arith.constant 0 : index
    %21 = vector.load %arg6[%c0_12, %c0_13] : memref<10x20xf32, #tpu.memory_space<vmem>>, vector<10x20xf32>
    %cst_14 = arith.constant dense<0.000000e+00> : vector<32x20xf32>
    %22 = tpu.matmul %20, %21, %cst_14 {dimension_numbers = #tpu.dot_dimension_numbers<[1], [0], [0], [1], [0, 0, 1, 1], [], []>} : vector<32x10xf32>, vector<10x20xf32>, vector<32x20xf32> -> vector<32x20xf32>
    %c0_15 = arith.constant 0 : index
    %c0_16 = arith.constant 0 : index
    %23 = vector.load %arg7[%c0_15, %c0_16] : memref<1x20xf32, #tpu.memory_space<vmem>>, vector<1x20xf32>
    %24 = vector.broadcast %23 : vector<1x20xf32> to vector<32x20xf32>
    %25 = arith.addf %22, %24 : vector<32x20xf32>
    %26 = arith.negf %25 : vector<32x20xf32>
    %27 = math.exp %26 : vector<32x20xf32>
    %cst_17 = arith.constant 1.000000e+00 : f32
    %28 = vector.broadcast %cst_17 : f32 to vector<32x20xf32>
    %29 = arith.addf %28, %27 : vector<32x20xf32>
    %30 = arith.divf %28, %29 : vector<32x20xf32>
    %c0_18 = arith.constant 0 : index
    %c0_19 = arith.constant 0 : index
    %31 = vector.load %arg8[%c0_18, %c0_19] : memref<20x256xf32, #tpu.memory_space<vmem>>, vector<20x256xf32>
    %cst_20 = arith.constant dense<0.000000e+00> : vector<32x256xf32>
    %32 = tpu.matmul %30, %31, %cst_20 {dimension_numbers = #tpu.dot_dimension_numbers<[1], [0], [0], [1], [0, 0, 1, 1], [], []>} : vector<32x20xf32>, vector<20x256xf32>, vector<32x256xf32> -> vector<32x256xf32>
    %c0_21 = arith.constant 0 : index
    %c0_22 = arith.constant 0 : index
    %33 = vector.load %arg9[%c0_21, %c0_22] : memref<1x256xf32, #tpu.memory_space<vmem>>, vector<1x256xf32>
    %34 = vector.broadcast %33 : vector<1x256xf32> to vector<32x256xf32>
    %35 = arith.addf %32, %34 : vector<32x256xf32>
    %c0_23 = arith.constant 0 : index
    %c0_24 = arith.constant 0 : index
    %36 = vector.load %arg10[%c0_23, %c0_24] : memref<32x256xf32, #tpu.memory_space<vmem>>, vector<32x256xf32>
    tpu.vector_store %arg10[%c0_23, %c0_24], %35 {strides = array<i32>} : memref<32x256xf32, #tpu.memory_space<vmem>>, vector<32x256xf32>,
    return
  }
  func.func @transform_0(%arg0: i32) -> (i32, i32) {
    %c0_i32 = arith.constant 0 : i32
    %c0_i32_0 = arith.constant 0 : i32
    return %arg0, %c0_i32 : i32, i32
  }
  func.func @transform_1(%arg0: i32) -> (i32, i32) {
    %c0_i32 = arith.constant 0 : i32
    %c0_i32_0 = arith.constant 0 : i32
    %c0_i32_1 = arith.constant 0 : i32
    return %c0_i32, %c0_i32_0 : i32, i32
  }
  func.func @transform_2(%arg0: i32) -> (i32, i32) {
    %c0_i32 = arith.constant 0 : i32
    %c0_i32_0 = arith.constant 0 : i32
    %c0_i32_1 = arith.constant 0 : i32
    return %c0_i32, %c0_i32_0 : i32, i32
  }
  func.func @transform_3(%arg0: i32) -> (i32, i32) {
    %c0_i32 = arith.constant 0 : i32
    %c0_i32_0 = arith.constant 0 : i32
    %c0_i32_1 = arith.constant 0 : i32
    return %c0_i32, %c0_i32_0 : i32, i32
  }
  func.func @transform_4(%arg0: i32) -> (i32, i32) {
    %c0_i32 = arith.constant 0 : i32
    %c0_i32_0 = arith.constant 0 : i32
    %c0_i32_1 = arith.constant 0 : i32
    return %c0_i32, %c0_i32_0 : i32, i32
  }
  func.func @transform_5(%arg0: i32) -> (i32, i32) {
    %c0_i32 = arith.constant 0 : i32
    %c0_i32_0 = arith.constant 0 : i32
    %c0_i32_1 = arith.constant 0 : i32
    return %c0_i32, %c0_i32_0 : i32, i32
  }
  func.func @transform_6(%arg0: i32) -> (i32, i32) {
    %c0_i32 = arith.constant 0 : i32
    %c0_i32_0 = arith.constant 0 : i32
    %c0_i32_1 = arith.constant 0 : i32
    return %c0_i32, %c0_i32_0 : i32, i32
  }
  func.func @transform_7(%arg0: i32) -> (i32, i32) {
    %c0_i32 = arith.constant 0 : i32
    %c0_i32_0 = arith.constant 0 : i32
    %c0_i32_1 = arith.constant 0 : i32
    return %c0_i32, %c0_i32_0 : i32, i32
  }
  func.func @transform_8(%arg0: i32) -> (i32, i32) {
    %c0_i32 = arith.constant 0 : i32
    %c0_i32_0 = arith.constant 0 : i32
    %c0_i32_1 = arith.constant 0 : i32
    return %c0_i32, %c0_i32_0 : i32, i32
  }
  func.func @transform_9(%arg0: i32) -> (i32, i32) {
    %c0_i32 = arith.constant 0 : i32
    %c0_i32_0 = arith.constant 0 : i32
    return %arg0, %c0_i32 : i32, i32
  }
}

</mosaic_0001>

<llo_original>
// kernel: tpu_custom_call.1
$region0: #{tpu_custom_call.1}
  #allocation0 [shape = 'u32[]', space=smem, size = 0x4, offset = 0x4, fixed_abs, tag = 'smem constant byte address 0x4 - core index']
  #allocation1 [shape = 'u32[72,128]{1,0:T(1,128)}', space=vmem, size = 0x9000, scoped, tag = 'internal scratch']
  %s0 = inlined_call_operand.vmem [shape: f32[64,256], index: 0, kind: input, shape index: {}]
  %s1 = inlined_call_operand.vmem [shape: f32[256,20], index: 1, kind: input, shape index: {}]
  %s2 = inlined_call_operand.vmem [shape: f32[1,20], index: 2, kind: input, shape index: {}]
  %s3 = inlined_call_operand.vmem [shape: f32[20,10], index: 3, kind: input, shape index: {}]
  %s4 = inlined_call_operand.vmem [shape: f32[1,10], index: 4, kind: input, shape index: {}]
  %s5 = inlined_call_operand.vmem [shape: f32[10,20], index: 5, kind: input, shape index: {}]
  %s6 = inlined_call_operand.vmem [shape: f32[1,20], index: 6, kind: input, shape index: {}]
  %s7 = inlined_call_operand.vmem [shape: f32[20,256], index: 7, kind: input, shape index: {}]
  %s8 = inlined_call_operand.vmem [shape: f32[1,256], index: 8, kind: input, shape index: {}]
  %s9 = inlined_call_operand.hbm [shape: f32[64,256], index: 9, kind: output, shape index: {}]
  %s10 = sld [smem:[#allocation0]]
  $region69: #{tpu_custom_call.1} parent=0
    _
  %s12 = ssub.s32 1, %s10
  %s13 = scalar_select 0, %s12, %s10
  $region1: #{tpu_custom_call.1} parent=0
    #allocation2 [shape = 'u8[65536]{0}', space=vmem, size = 0x10000, scoped, tag = 'output window, operand 0']
    #allocation3 [shape = 's32[2]{0}', space=sflag, size = 0x8, scoped, tag = 'scoped memory for tpu_custom_call.1']
    %14 = vsyncpa [#allocation3], 0
    %s15 = scalar_lea.sflag [#allocation3], 1
    %16 = vsyncpa %s15, 0
    loop: start=0, step=1, limit=4
    $region2: #{tpu_custom_call.1} parent=1 // loop_pre_header
      _
    $region3: #{tpu_custom_call.1} parent=1 // loop_header
      %s18 = sphi 0, %s22
      %p19 = scmp.ge.s32.totalorder %s18, 4
      %s28 = sphi 0, %s30
      %s31 = sphi 0, %s28
      %s32 = sphi 0, %s31
      %s48 = sphi 0, %s32
      %s52 = sphi 0, %s52
      %s54 = sphi 0, %s52
      %s55 = sphi 0, %s54
      %s69 = sphi 0, %s55
      %s73 = sphi 0, %s73
      %s75 = sphi 0, %s73
      %s76 = sphi 0, %s75
      %s90 = sphi 0, %s76
      %s94 = sphi 0, %s94
      %s96 = sphi 0, %s94
      %s97 = sphi 0, %s96
      %s111 = sphi 0, %s97
      %s115 = sphi 0, %s115
      %s117 = sphi 0, %s115
      %s118 = sphi 0, %s117
      %s132 = sphi 0, %s118
      %s136 = sphi 0, %s136
      %s138 = sphi 0, %s136
      %s139 = sphi 0, %s138
      %s153 = sphi 0, %s139
      %s157 = sphi 0, %s157
      %s159 = sphi 0, %s157
      %s160 = sphi 0, %s159
      %s174 = sphi 0, %s160
      %s178 = sphi 0, %s178
      %s180 = sphi 0, %s178
      %s181 = sphi 0, %s180
      %s195 = sphi 0, %s181
      %s199 = sphi 0, %s199
      %s201 = sphi 0, %s199
      %s202 = sphi 0, %s201
      %s216 = sphi 0, %s202
      %s222 = sphi 0, %s224
      %s225 = sphi 0, %s222
      %s226 = sphi 0, %s225
      %s242 = sphi 0, %s226
    $region4: #{tpu_custom_call.1} parent=1 // loop_header_branch
      %21 = sbr.rel (%p19) target = $region8
    $region5: #{tpu_custom_call.1} parent=1 // loop_body
      %s23 = ssub.s32 %s18, 1
      %s24 = ssub.s32 %s18, 2
      %s25 = sadd.s32 %s18, 1
      %s26 = ssub.s32 %s18, %s25
      %p27 = scmp.eq.s32.totalorder %s26, 0
      %s29 = sadd.s32 %s28, 1
      %s30 = scalar_select %p27, %s28, %s29
      %p33 = pneg %p27
      %p34 = scmp.eq.s32.totalorder %s18, 1
      %p35 = por %p33, %p34
      %p36 = scmp.ne.s32.totalorder %s28, %s31
      %p37 = scmp.eq.s32.totalorder %s18, 0
      %p38 = por %p36, %p37
      %p39 = scmp.ne.s32.totalorder %s28, %s31
      %p40 = scmp.eq.s32.totalorder %s23, 1
      %p41 = por %p39, %p40
      %p42 = scmp.ne.s32.totalorder %s31, %s32
      %p43 = scmp.eq.s32.totalorder %s23, 0
      %p44 = por %p42, %p43
      %p45 = scmp.ne.s32.totalorder %s31, %s32
      %p46 = scmp.eq.s32.totalorder %s24, 1
      %p47 = por %p45, %p46
      %p49 = scmp.ne.s32.totalorder %s32, %s48
      %p50 = scmp.eq.s32.totalorder %s24, 0
      %p51 = por %p49, %p50
      %s53 = sadd.s32 %s52, 1
      %p56 = scmp.eq.s32.totalorder %s18, 1
      %p57 = scmp.ne.s32.totalorder %s52, %s54
      %p58 = scmp.eq.s32.totalorder %s18, 0
      %p59 = por %p57, %p58
      %p60 = scmp.ne.s32.totalorder %s52, %s54
      %p61 = scmp.eq.s32.totalorder %s23, 1
      %p62 = por %p60, %p61
      %p63 = scmp.ne.s32.totalorder %s54, %s55
      %p64 = scmp.eq.s32.totalorder %s23, 0
      %p65 = por %p63, %p64
      %p66 = scmp.ne.s32.totalorder %s54, %s55
      %p67 = scmp.eq.s32.totalorder %s24, 1
      %p68 = por %p66, %p67
      %p70 = scmp.ne.s32.totalorder %s55, %s69
      %p71 = scmp.eq.s32.totalorder %s24, 0
      %p72 = por %p70, %p71
      %s74 = sadd.s32 %s73, 1
      %p77 = scmp.eq.s32.totalorder %s18, 1
      %p78 = scmp.ne.s32.totalorder %s73, %s75
      %p79 = scmp.eq.s32.totalorder %s18, 0
      %p80 = por %p78, %p79
      %p81 = scmp.ne.s32.totalorder %s73, %s75
      %p82 = scmp.eq.s32.totalorder %s23, 1
      %p83 = por %p81, %p82
      %p84 = scmp.ne.s32.totalorder %s75, %s76
      %p85 = scmp.eq.s32.totalorder %s23, 0
      %p86 = por %p84, %p85
      %p87 = scmp.ne.s32.totalorder %s75, %s76
      %p88 = scmp.eq.s32.totalorder %s24, 1
      %p89 = por %p87, %p88
      %p91 = scmp.ne.s32.totalorder %s76, %s90
      %p92 = scmp.eq.s32.totalorder %s24, 0
      %p93 = por %p91, %p92
      %s95 = sadd.s32 %s94, 1
      %p98 = scmp.eq.s32.totalorder %s18, 1
      %p99 = scmp.ne.s32.totalorder %s94, %s96
      %p100 = scmp.eq.s32.totalorder %s18, 0
      %p101 = por %p99, %p100
      %p102 = scmp.ne.s32.totalorder %s94, %s96
      %p103 = scmp.eq.s32.totalorder %s23, 1
      %p104 = por %p102, %p103
      %p105 = scmp.ne.s32.totalorder %s96, %s97
      %p106 = scmp.eq.s32.totalorder %s23, 0
      %p107 = por %p105, %p106
      %p108 = scmp.ne.s32.totalorder %s96, %s97
      %p109 = scmp.eq.s32.totalorder %s24, 1
      %p110 = por %p108, %p109
      %p112 = scmp.ne.s32.totalorder %s97, %s111
      %p113 = scmp.eq.s32.totalorder %s24, 0
      %p114 = por %p112, %p113
      %s116 = sadd.s32 %s115, 1
      %p119 = scmp.eq.s32.totalorder %s18, 1
      %p120 = scmp.ne.s32.totalorder %s115, %s117
      %p121 = scmp.eq.s32.totalorder %s18, 0
      %p122 = por %p120, %p121
      %p123 = scmp.ne.s32.totalorder %s115, %s117
      %p124 = scmp.eq.s32.totalorder %s23, 1
      %p125 = por %p123, %p124
      %p126 = scmp.ne.s32.totalorder %s117, %s118
      %p127 = scmp.eq.s32.totalorder %s23, 0
      %p128 = por %p126, %p127
      %p129 = scmp.ne.s32.totalorder %s117, %s118
      %p130 = scmp.eq.s32.totalorder %s24, 1
      %p131 = por %p129, %p130
      %p133 = scmp.ne.s32.totalorder %s118, %s132
      %p134 = scmp.eq.s32.totalorder %s24, 0
      %p135 = por %p133, %p134
      %s137 = sadd.s32 %s136, 1
      %p140 = scmp.eq.s32.totalorder %s18, 1
      %p141 = scmp.ne.s32.totalorder %s136, %s138
      %p142 = scmp.eq.s32.totalorder %s18, 0
      %p143 = por %p141, %p142
      %p144 = scmp.ne.s32.totalorder %s136, %s138
      %p145 = scmp.eq.s32.totalorder %s23, 1
      %p146 = por %p144, %p145
      %p147 = scmp.ne.s32.totalorder %s138, %s139
      %p148 = scmp.eq.s32.totalorder %s23, 0
      %p149 = por %p147, %p148
      %p150 = scmp.ne.s32.totalorder %s138, %s139
      %p151 = scmp.eq.s32.totalorder %s24, 1
      %p152 = por %p150, %p151
      %p154 = scmp.ne.s32.totalorder %s139, %s153
      %p155 = scmp.eq.s32.totalorder %s24, 0
      %p156 = por %p154, %p155
      %s158 = sadd.s32 %s157, 1
      %p161 = scmp.eq.s32.totalorder %s18, 1
      %p162 = scmp.ne.s32.totalorder %s157, %s159
      %p163 = scmp.eq.s32.totalorder %s18, 0
      %p164 = por %p162, %p163
      %p165 = scmp.ne.s32.totalorder %s157, %s159
      %p166 = scmp.eq.s32.totalorder %s23, 1
      %p167 = por %p165, %p166
      %p168 = scmp.ne.s32.totalorder %s159, %s160
      %p169 = scmp.eq.s32.totalorder %s23, 0
      %p170 = por %p168, %p169
      %p171 = scmp.ne.s32.totalorder %s159, %s160
      %p172 = scmp.eq.s32.totalorder %s24, 1
      %p173 = por %p171, %p172
      %p175 = scmp.ne.s32.totalorder %s160, %s174
      %p176 = scmp.eq.s32.totalorder %s24, 0
      %p177 = por %p175, %p176
      %s179 = sadd.s32 %s178, 1
      %p182 = scmp.eq.s32.totalorder %s18, 1
      %p183 = scmp.ne.s32.totalorder %s178, %s180
      %p184 = scmp.eq.s32.totalorder %s18, 0
      %p185 = por %p183, %p184
      %p186 = scmp.ne.s32.totalorder %s178, %s180
      %p187 = scmp.eq.s32.totalorder %s23, 1
      %p188 = por %p186, %p187
      %p189 = scmp.ne.s32.totalorder %s180, %s181
      %p190 = scmp.eq.s32.totalorder %s23, 0
      %p191 = por %p189, %p190
      %p192 = scmp.ne.s32.totalorder %s180, %s181
      %p193 = scmp.eq.s32.totalorder %s24, 1
      %p194 = por %p192, %p193
      %p196 = scmp.ne.s32.totalorder %s181, %s195
      %p197 = scmp.eq.s32.totalorder %s24, 0
      %p198 = por %p196, %p197
      %s200 = sadd.s32 %s199, 1
      %p203 = scmp.eq.s32.totalorder %s18, 1
      %p204 = scmp.ne.s32.totalorder %s199, %s201
      %p205 = scmp.eq.s32.totalorder %s18, 0
      %p206 = por %p204, %p205
      %p207 = scmp.ne.s32.totalorder %s199, %s201
      %p208 = scmp.eq.s32.totalorder %s23, 1
      %p209 = por %p207, %p208
      %p210 = scmp.ne.s32.totalorder %s201, %s202
      %p211 = scmp.eq.s32.totalorder %s23, 0
      %p212 = por %p210, %p211
      %p213 = scmp.ne.s32.totalorder %s201, %s202
      %p214 = scmp.eq.s32.totalorder %s24, 1
      %p215 = por %p213, %p214
      %p217 = scmp.ne.s32.totalorder %s202, %s216
      %p218 = scmp.eq.s32.totalorder %s24, 0
      %p219 = por %p217, %p218
      %s220 = ssub.s32 %s18, %s25
      %p221 = scmp.eq.s32.totalorder %s220, 0
      %s223 = sadd.s32 %s222, 1
      %s224 = scalar_select %p221, %s222, %s223
      %p227 = pneg %p221
      %p228 = scmp.eq.s32.totalorder %s18, 1
      %p229 = por %p227, %p228
      %p230 = scmp.ne.s32.totalorder %s222, %s225
      %p231 = scmp.eq.s32.totalorder %s18, 0
      %p232 = por %p230, %p231
      %p233 = scmp.ne.s32.totalorder %s222, %s225
      %p234 = scmp.eq.s32.totalorder %s23, 1
      %p235 = por %p233, %p234
      %p236 = scmp.ne.s32.totalorder %s225, %s226
      %p237 = scmp.eq.s32.totalorder %s23, 0
      %p238 = por %p236, %p237
      %p239 = scmp.ne.s32.totalorder %s225, %s226
      %p240 = scmp.eq.s32.totalorder %s24, 1
      %p241 = por %p239, %p240
      %p243 = scmp.ne.s32.totalorder %s226, %s242
      %p244 = scmp.eq.s32.totalorder %s24, 0
      %p245 = por %p243, %p244
      %p246 = scmp.le.s32.totalorder 1, %s18
      %p247 = scmp.lt.s32.totalorder %s18, 3
      %p248 = pnand %p246, %p247
      %p249 = pneg %p248
      // Predicated region
      $region9: #{tpu_custom_call.1} parent=5 // pred_check
        _
      $region10: #{tpu_custom_call.1} parent=5 // pred_check_branch
        %251 = sbr.rel (%p248) target = $region12
      $region11: #{tpu_custom_call.1} parent=5 // pred_region
        %s252 = ssub.s32 %s18, 1
        // Predicated region
        $region13: #{tpu_custom_call.1} parent=11 // pred_check
          %p253 = pneg %p65
        $region14: #{tpu_custom_call.1} parent=11 // pred_check_branch
          %255 = sbr.rel (%p253) target = $region16
        $region15: #{tpu_custom_call.1} parent=11 // pred_region
          _
        $region16: #{tpu_custom_call.1} parent=11 // pred_fallthru
          _
        // Predicated region
        $region17: #{tpu_custom_call.1} parent=11 // pred_check
          %p256 = pneg %p86
        $region18: #{tpu_custom_call.1} parent=11 // pred_check_branch
          %258 = sbr.rel (%p256) target = $region20
        $region19: #{tpu_custom_call.1} parent=11 // pred_region
          _
        $region20: #{tpu_custom_call.1} parent=11 // pred_fallthru
          _
        // Predicated region
        $region21: #{tpu_custom_call.1} parent=11 // pred_check
          %p259 = pneg %p107
        $region22: #{tpu_custom_call.1} parent=11 // pred_check_branch
          %261 = sbr.rel (%p259) target = $region24
        $region23: #{tpu_custom_call.1} parent=11 // pred_region
          _
        $region24: #{tpu_custom_call.1} parent=11 // pred_fallthru
          _
        // Predicated region
        $region25: #{tpu_custom_call.1} parent=11 // pred_check
          %p262 = pneg %p128
        $region26: #{tpu_custom_call.1} parent=11 // pred_check_branch
          %264 = sbr.rel (%p262) target = $region28
        $region27: #{tpu_custom_call.1} parent=11 // pred_region
          _
        $region28: #{tpu_custom_call.1} parent=11 // pred_fallthru
          _
        // Predicated region
        $region29: #{tpu_custom_call.1} parent=11 // pred_check
          %p265 = pneg %p149
        $region30: #{tpu_custom_call.1} parent=11 // pred_check_branch
          %267 = sbr.rel (%p265) target = $region32
        $region31: #{tpu_custom_call.1} parent=11 // pred_region
          _
        $region32: #{tpu_custom_call.1} parent=11 // pred_fallthru
          _
        // Predicated region
        $region33: #{tpu_custom_call.1} parent=11 // pred_check
          %p268 = pneg %p170
        $region34: #{tpu_custom_call.1} parent=11 // pred_check_branch
          %270 = sbr.rel (%p268) target = $region36
        $region35: #{tpu_custom_call.1} parent=11 // pred_region
          _
        $region36: #{tpu_custom_call.1} parent=11 // pred_fallthru
          _
        // Predicated region
        $region37: #{tpu_custom_call.1} parent=11 // pred_check
          %p271 = pneg %p191
        $region38: #{tpu_custom_call.1} parent=11 // pred_check_branch
          %273 = sbr.rel (%p271) target = $region40
        $region39: #{tpu_custom_call.1} parent=11 // pred_region
          _
        $region40: #{tpu_custom_call.1} parent=11 // pred_fallthru
          _
        // Predicated region
        $region41: #{tpu_custom_call.1} parent=11 // pred_check
          %p274 = pneg %p212
        $region42: #{tpu_custom_call.1} parent=11 // pred_check_branch
          %276 = sbr.rel (%p274) target = $region44
        $region43: #{tpu_custom_call.1} parent=11 // pred_region
          _
        $region44: #{tpu_custom_call.1} parent=11 // pred_fallthru
          _
      $region12: #{tpu_custom_call.1} parent=5 // pred_fallthru
        _
      %p277 = scmp.lt.s32.totalorder %s18, 2
      // Predicated region
      $region45: #{tpu_custom_call.1} parent=5 // pred_check
        %p278 = pneg %p277
      $region46: #{tpu_custom_call.1} parent=5 // pred_check_branch
        %280 = sbr.rel (%p278) target = $region48
      $region47: #{tpu_custom_call.1} parent=5 // pred_region
        // Predicated region
        $region49: #{tpu_custom_call.1} parent=47 // pred_check
          %p281 = pneg %p38
        $region50: #{tpu_custom_call.1} parent=47 // pred_check_branch
          %283 = sbr.rel (%p281) target = $region52
        $region51: #{tpu_custom_call.1} parent=47 // pred_region
          %s284 = smul.u32 4, %s18
          %p285 = scmp.lt.s32.totalorder %s284, 7
          %s286 = scalar_select %p285, %s284, 7
          %s287 = smul.addr %s286, 2
          %s288 = smul.addr %s287, 8
          %s289 = scalar_lea.vmem %s0, %s288
          %s290 = smul.u32 4, %s18
        $region52: #{tpu_custom_call.1} parent=47 // pred_fallthru
          _
      $region48: #{tpu_custom_call.1} parent=5 // pred_fallthru
        _
      %p291 = scmp.le.s32.totalorder 1, %s18
      %p292 = scmp.lt.s32.totalorder %s18, 3
      %p293 = pnand %p291, %p292
      %p294 = pneg %p293
      // Predicated region
      $region53: #{tpu_custom_call.1} parent=5 // pred_check
        _
      $region54: #{tpu_custom_call.1} parent=5 // pred_check_branch
        %296 = sbr.rel (%p293) target = $region56
      $region55: #{tpu_custom_call.1} parent=5 // pred_region
        %s297 = ssub.s32 %s18, 1
        %s298 = smul.u32 4, %s23
        %p299 = scmp.lt.s32.totalorder %s298, 7
        %s300 = scalar_select %p299, %s298, 7
        %s301 = smul.addr %s300, 2
        %s302 = smul.addr %s301, 8
        %s303 = scalar_lea.vmem %s0, %s302
        %p304 = pneg %p44
        %p305 = pneg %p41
        %p306 = pneg %p65
        %p307 = pneg %p62
        %p308 = pneg %p86
        %p309 = pneg %p83
        %p310 = pneg %p107
        %p311 = pneg %p104
        %p312 = pneg %p128
        %p313 = pneg %p125
        %p314 = pneg %p149
        %p315 = pneg %p146
        %p316 = pneg %p170
        %p317 = pneg %p167
        %p318 = pneg %p191
        %p319 = pneg %p188
        %p320 = pneg %p212
        %p321 = pneg %p209
        %p322 = pneg %p238
        %p323 = pneg %p235
        %s324 = sand.u32 %s225, 1
        %s325 = scalar_lea.sflag [#allocation3], %s324
        %s326 = sand.u32 %s225, 1
        %s327 = smul.addr %s326, 64
        %s328 = scalar_lea.vmem [#allocation2], %s327
        %s329 = smul.u32 4, %s23
        %p330 = scmp.lt.s32.totalorder %s329, 7
        %s331 = scalar_select %p330, %s329, 7
        %s332 = smul.addr %s331, 2
        %s333 = smul.addr %s332, 8
        %s334 = scalar_lea.vmem %s0, %s333
        %s335 = smul.u32 4, %s23
        %s336 = smul.u32 4, %s23
        %v337 = vld [vmem:[%s334] sm:$0xff]
        %v338 = vld [vmem:[%s334 + $0x8] sm:$0xff]
        %v339 = vld [vmem:[%s334 + $0x10] sm:$0xff]
        %v340 = vld [vmem:[%s334 + $0x18] sm:$0xff]
        %v341 = vld [vmem:[%s334 + $0x20] sm:$0xff]
        %v342 = vld [vmem:[%s334 + $0x28] sm:$0xff]
        %v343 = vld [vmem:[%s334 + $0x30] sm:$0xff]
        %v344 = vld [vmem:[%s334 + $0x38] sm:$0xff]
        %v345 = vld [vmem:[%s1] sm:$0xff]
        %v346 = vld [vmem:[%s1 + $0x8] sm:$0xff]
        %v347 = vld [vmem:[%s1 + $0x10] sm:$0xff]
        %v348 = vld [vmem:[%s1 + $0x18] sm:$0xff]
        %v349 = vld [vmem:[%s1 + $0x20] sm:$0xff]
        %v350 = vld [vmem:[%s1 + $0x28] sm:$0xff]
        %v351 = vld [vmem:[%s1 + $0x30] sm:$0xff]
        %v352 = vld [vmem:[%s1 + $0x38] sm:$0xff]
        %v353 = vld [vmem:[%s1 + $0x40] sm:$0xff]
        %v354 = vld [vmem:[%s1 + $0x48] sm:$0xff]
        %v355 = vld [vmem:[%s1 + $0x50] sm:$0xff]
        %v356 = vld [vmem:[%s1 + $0x58] sm:$0xff]
        %v357 = vld [vmem:[%s1 + $0x60] sm:$0xff]
        %v358 = vld [vmem:[%s1 + $0x68] sm:$0xff]
        %v359 = vld [vmem:[%s1 + $0x70] sm:$0xff]
        %v360 = vld [vmem:[%s1 + $0x78] sm:$0xff]
        %v361 = vld [vmem:[%s1 + $0x80] sm:$0xff]
        %v362 = vld [vmem:[%s1 + $0x88] sm:$0xff]
        %v363 = vld [vmem:[%s1 + $0x90] sm:$0xff]
        %v364 = vld [vmem:[%s1 + $0x98] sm:$0xff]
        %v365 = vld [vmem:[%s1 + $0xa0] sm:$0xff]
        %v366 = vld [vmem:[%s1 + $0xa8] sm:$0xff]
        %v367 = vld [vmem:[%s1 + $0xb0] sm:$0xff]
        %v368 = vld [vmem:[%s1 + $0xb8] sm:$0xff]
        %v369 = vld [vmem:[%s1 + $0xc0] sm:$0xff]
        %v370 = vld [vmem:[%s1 + $0xc8] sm:$0xff]
        %v371 = vld [vmem:[%s1 + $0xd0] sm:$0xff]
        %v372 = vld [vmem:[%s1 + $0xd8] sm:$0xff]
        %v373 = vld [vmem:[%s1 + $0xe0] sm:$0xff]
        %v374 = vld [vmem:[%s1 + $0xe8] sm:$0xff]
        %v375 = vld [vmem:[%s1 + $0xf0] sm:$0xff]
        %v376 = vld [vmem:[%s1 + $0xf8] sm:$0xff]
        %v377 = vld [vmem:[%s2] sm:$0x1]
        %v379 = vperm.slane %v377, 0
        %381 = vmatpush.msra.mxu0 %v360
        %382 = vmatpush.msra.mxu0 %v359
        %383 = vmatpush.msra.mxu0 %v358
        %384 = vmatpush.msra.mxu0 %v357
        %385 = vmatpush.msra.mxu0 %v356
        %386 = vmatpush.msra.mxu0 %v355
        %387 = vmatpush.msra.mxu0 %v354
        %388 = vmatpush.msra.mxu0 %v353
        %389 = vmatpush.msra.mxu0 %v352
        %390 = vmatpush.msra.mxu0 %v351
        %391 = vmatpush.msra.mxu0 %v350
        %392 = vmatpush.msra.mxu0 %v349
        %393 = vmatpush.msra.mxu0 %v348
        %394 = vmatpush.msra.mxu0 %v347
        %395 = vmatpush.msra.mxu0 %v346
        %396 = vmatpush.msra.mxu0 %v345
        %397 = vmatmul.f32.gmra.mxu0 %v337
        %v398 = vpop.f32.mrf.mxu0
        %v399 = vadd.f32 %v379, %v398
        %400 = vmatmul.f32.gmra.mxu0 %v339
        %v401 = vpop.f32.mrf.mxu0
        %v402 = vadd.f32 %v379, %v401
        %403 = vmatmul.f32.gmra.mxu0 %v341
        %v404 = vpop.f32.mrf.mxu0
        %v405 = vadd.f32 %v379, %v404
        %406 = vmatmul.f32.gmra.mxu0 %v343
        %v407 = vpop.f32.mrf.mxu0
        %v408 = vadd.f32 %v379, %v407
        %409 = vdwg.mxu0
        %410 = vmatpush.msra.mxu0 %v376
        %411 = vmatpush.msra.mxu0 %v375
        %412 = vmatpush.msra.mxu0 %v374
        %413 = vmatpush.msra.mxu0 %v373
        %414 = vmatpush.msra.mxu0 %v372
        %415 = vmatpush.msra.mxu0 %v371
        %416 = vmatpush.msra.mxu0 %v370
        %417 = vmatpush.msra.mxu0 %v369
        %418 = vmatpush.msra.mxu0 %v368
        %419 = vmatpush.msra.mxu0 %v367
        %420 = vmatpush.msra.mxu0 %v366
        %421 = vmatpush.msra.mxu0 %v365
        %422 = vmatpush.msra.mxu0 %v364
        %423 = vmatpush.msra.mxu0 %v363
        %424 = vmatpush.msra.mxu0 %v362
        %425 = vmatpush.msra.mxu0 %v361
        %426 = vmatmul.f32.gmra.mxu0 %v338
        %v427 = vpop.f32.mrf.mxu0
        %v428 = vadd.f32 %v399, %v427
        %429 = vmatmul.f32.gmra.mxu0 %v340
        %v430 = vpop.f32.mrf.mxu0
        %v431 = vadd.f32 %v402, %v430
        %432 = vmatmul.f32.gmra.mxu0 %v342
        %v433 = vpop.f32.mrf.mxu0
        %v434 = vadd.f32 %v405, %v433
        %435 = vmatmul.f32.gmra.mxu0 %v344
        %v436 = vpop.f32.mrf.mxu0
        %v437 = vadd.f32 %v408, %v436
        %438 = vdwg.mxu0
        %v439 = vxor.u32 %v428, 2147483648
        %v440 = vxor.u32 %v431, 2147483648
        %v441 = vxor.u32 %v434, 2147483648
        %v442 = vxor.u32 %v437, 2147483648
        %v443 = vmul.f32 %v439, 1.442695
        %v444 = vpow.pop %v443
        %v445 = vmul.f32 %v440, 1.442695
        %v446 = vpow.pop %v445
        %v447 = vmul.f32 %v441, 1.442695
        %v448 = vpow.pop %v447
        %v449 = vmul.f32 %v442, 1.442695
        %v450 = vpow.pop %v449
        %v451 = vadd.f32 %v444, 1.0
        %v452 = vadd.f32 %v446, 1.0
        %v453 = vadd.f32 %v448, 1.0
        %v454 = vadd.f32 %v450, 1.0
        %v455 = vrcp.pop %v451
        %v456 = vmul.f32 %v451, %v455
        %v457 = vsub.f32 1.0, %v456
        %v458 = vmul.f32 %v455, %v457
        %v459 = vadd.f32 %v455, %v458
        %vm460 = vweird.f32 %v451
        %vm461 = vweird.f32 %v455
        %vm462 = vmor %vm460, %vm461
        %v463 = vsel %vm462, %v455, %v459
        %v464 = vand.u32 2147483647, %v451
        %vm465 = vcmp.eq.f32.partialorder %v464, 8.507059e+37
        %v466 = vand.u32 %v451, 2147483648
        %v467 = vor.u32 1.1754944e-38, %v466
        %v468 = vsel %vm465, %v467, %v463
        %v469 = vmul.f32 1.0, %v468
        %v470 = vrcp.pop %v452
        %v471 = vmul.f32 %v452, %v470
        %v472 = vsub.f32 1.0, %v471
        %v473 = vmul.f32 %v470, %v472
        %v474 = vadd.f32 %v470, %v473
        %vm475 = vweird.f32 %v452
        %vm476 = vweird.f32 %v470
        %vm477 = vmor %vm475, %vm476
        %v478 = vsel %vm477, %v470, %v474
        %v479 = vand.u32 2147483647, %v452
        %vm480 = vcmp.eq.f32.partialorder %v479, 8.507059e+37
        %v481 = vand.u32 %v452, 2147483648
        %v482 = vor.u32 1.1754944e-38, %v481
        %v483 = vsel %vm480, %v482, %v478
        %v484 = vmul.f32 1.0, %v483
        %v485 = vrcp.pop %v453
        %v486 = vmul.f32 %v453, %v485
        %v487 = vsub.f32 1.0, %v486
        %v488 = vmul.f32 %v485, %v487
        %v489 = vadd.f32 %v485, %v488
        %vm490 = vweird.f32 %v453
        %vm491 = vweird.f32 %v485
        %vm492 = vmor %vm490, %vm491
        %v493 = vsel %vm492, %v485, %v489
        %v494 = vand.u32 2147483647, %v453
        %vm495 = vcmp.eq.f32.partialorder %v494, 8.507059e+37
        %v496 = vand.u32 %v453, 2147483648
        %v497 = vor.u32 1.1754944e-38, %v496
        %v498 = vsel %vm495, %v497, %v493
        %v499 = vmul.f32 1.0, %v498
        %v500 = vrcp.pop %v454
        %v501 = vmul.f32 %v454, %v500
        %v502 = vsub.f32 1.0, %v501
        %v503 = vmul.f32 %v500, %v502
        %v504 = vadd.f32 %v500, %v503
        %vm505 = vweird.f32 %v454
        %vm506 = vweird.f32 %v500
        %vm507 = vmor %vm505, %vm506
        %v508 = vsel %vm507, %v500, %v504
        %v509 = vand.u32 2147483647, %v454
        %vm510 = vcmp.eq.f32.partialorder %v509, 8.507059e+37
        %v511 = vand.u32 %v454, 2147483648
        %v512 = vor.u32 1.1754944e-38, %v511
        %v513 = vsel %vm510, %v512, %v508
        %v514 = vmul.f32 1.0, %v513
        %v515 = vld [vmem:[%s3] sm:$0xff]
        %v516 = vld [vmem:[%s3 + $0x8] sm:$0xff]
        %v517 = vld [vmem:[%s3 + $0x10] sm:$0xf]
        %v518 = vld [vmem:[%s4] sm:$0x1]
        %v520 = vperm.slane %v518, 0
        %vm522 = vcmask 162816
        %v524 = vsel %vm522, %v469, 0
        %v527 = vsel %vm522, %v484, 0
        %v530 = vsel %vm522, %v499, 0
        %v533 = vsel %vm522, %v514, 0
        %vm535 = vcmask 1043456
        %v537 = vsel %vm535, %v517, 0
        %539 = vmatpush.msra.mxu0 0.0
        %540 = vmatpush.msra.mxu0 0.0
        %541 = vmatpush.msra.mxu0 0.0
        %542 = vmatpush.msra.mxu0 0.0
        %543 = vmatpush.msra.mxu0 0.0
        %544 = vmatpush.msra.mxu0 0.0
        %545 = vmatpush.msra.mxu0 0.0
        %546 = vmatpush.msra.mxu0 0.0
        %547 = vmatpush.msra.mxu0 0.0
        %548 = vmatpush.msra.mxu0 0.0
        %549 = vmatpush.msra.mxu0 0.0
        %550 = vmatpush.msra.mxu0 0.0
        %551 = vmatpush.msra.mxu0 0.0
        %552 = vmatpush.msra.mxu0 %v537
        %553 = vmatpush.msra.mxu0 %v516
        %554 = vmatpush.msra.mxu0 %v515
        %555 = vmatmul.f32.gmra.mxu0 %v524
        %v556 = vpop.f32.mrf.mxu0
        %v557 = vadd.f32 %v520, %v556
        %558 = vmatmul.f32.gmra.mxu0 %v527
        %v559 = vpop.f32.mrf.mxu0
        %v560 = vadd.f32 %v520, %v559
        %561 = vmatmul.f32.gmra.mxu0 %v530
        %v562 = vpop.f32.mrf.mxu0
        %v563 = vadd.f32 %v520, %v562
        %564 = vmatmul.f32.gmra.mxu0 %v533
        %v565 = vpop.f32.mrf.mxu0
        %v566 = vadd.f32 %v520, %v565
        %567 = vdwg.mxu0
        %v568 = vxor.u32 %v557, 2147483648
        %v569 = vxor.u32 %v560, 2147483648
        %v570 = vxor.u32 %v563, 2147483648
        %v571 = vxor.u32 %v566, 2147483648
        %v572 = vmul.f32 %v568, 1.442695
        %v573 = vpow.pop %v572
        %v574 = vmul.f32 %v569, 1.442695
        %v575 = vpow.pop %v574
        %v576 = vmul.f32 %v570, 1.442695
        %v577 = vpow.pop %v576
        %v578 = vmul.f32 %v571, 1.442695
        %v579 = vpow.pop %v578
        %v580 = vadd.f32 %v573, 1.0
        %v581 = vadd.f32 %v575, 1.0
        %v582 = vadd.f32 %v577, 1.0
        %v583 = vadd.f32 %v579, 1.0
        %v584 = vrcp.pop %v580
        %v585 = vmul.f32 %v580, %v584
        %v586 = vsub.f32 1.0, %v585
        %v587 = vmul.f32 %v584, %v586
        %v588 = vadd.f32 %v584, %v587
        %vm589 = vweird.f32 %v580
        %vm590 = vweird.f32 %v584
        %vm591 = vmor %vm589, %vm590
        %v592 = vsel %vm591, %v584, %v588
        %v593 = vand.u32 2147483647, %v580
        %vm594 = vcmp.eq.f32.partialorder %v593, 8.507059e+37
        %v595 = vand.u32 %v580, 2147483648
        %v596 = vor.u32 1.1754944e-38, %v595
        %v597 = vsel %vm594, %v596, %v592
        %v598 = vmul.f32 1.0, %v597
        %v599 = vrcp.pop %v581
        %v600 = vmul.f32 %v581, %v599
        %v601 = vsub.f32 1.0, %v600
        %v602 = vmul.f32 %v599, %v601
        %v603 = vadd.f32 %v599, %v602
        %vm604 = vweird.f32 %v581
        %vm605 = vweird.f32 %v599
        %vm606 = vmor %vm604, %vm605
        %v607 = vsel %vm606, %v599, %v603
        %v608 = vand.u32 2147483647, %v581
        %vm609 = vcmp.eq.f32.partialorder %v608, 8.507059e+37
        %v610 = vand.u32 %v581, 2147483648
        %v611 = vor.u32 1.1754944e-38, %v610
        %v612 = vsel %vm609, %v611, %v607
        %v613 = vmul.f32 1.0, %v612
        %v614 = vrcp.pop %v582
        %v615 = vmul.f32 %v582, %v614
        %v616 = vsub.f32 1.0, %v615
        %v617 = vmul.f32 %v614, %v616
        %v618 = vadd.f32 %v614, %v617
        %vm619 = vweird.f32 %v582
        %vm620 = vweird.f32 %v614
        %vm621 = vmor %vm619, %vm620
        %v622 = vsel %vm621, %v614, %v618
        %v623 = vand.u32 2147483647, %v582
        %vm624 = vcmp.eq.f32.partialorder %v623, 8.507059e+37
        %v625 = vand.u32 %v582, 2147483648
        %v626 = vor.u32 1.1754944e-38, %v625
        %v627 = vsel %vm624, %v626, %v622
        %v628 = vmul.f32 1.0, %v627
        %v629 = vrcp.pop %v583
        %v630 = vmul.f32 %v583, %v629
        %v631 = vsub.f32 1.0, %v630
        %v632 = vmul.f32 %v629, %v631
        %v633 = vadd.f32 %v629, %v632
        %vm634 = vweird.f32 %v583
        %vm635 = vweird.f32 %v629
        %vm636 = vmor %vm634, %vm635
        %v637 = vsel %vm636, %v629, %v633
        %v638 = vand.u32 2147483647, %v583
        %vm639 = vcmp.eq.f32.partialorder %v638, 8.507059e+37
        %v640 = vand.u32 %v583, 2147483648
        %v641 = vor.u32 1.1754944e-38, %v640
        %v642 = vsel %vm639, %v641, %v637
        %v643 = vmul.f32 1.0, %v642
        %v644 = vld [vmem:[%s5] sm:$0xff]
        %v645 = vld [vmem:[%s5 + $0x8] sm:$0x3]
        %v646 = vld [vmem:[%s6] sm:$0x1]
        %v648 = vperm.slane %v646, 0
        %vm650 = vcmask 80896
        %v652 = vsel %vm650, %v598, 0
        %v655 = vsel %vm650, %v613, 0
        %v658 = vsel %vm650, %v628, 0
        %v661 = vsel %vm650, %v643, 0
        %vm663 = vcmask 1041408
        %v665 = vsel %vm663, %v645, 0
        %667 = vmatpush.msra.mxu0 0.0
        %668 = vmatpush.msra.mxu0 0.0
        %669 = vmatpush.msra.mxu0 0.0
        %670 = vmatpush.msra.mxu0 0.0
        %671 = vmatpush.msra.mxu0 0.0
        %672 = vmatpush.msra.mxu0 0.0
        %673 = vmatpush.msra.mxu0 0.0
        %674 = vmatpush.msra.mxu0 0.0
        %675 = vmatpush.msra.mxu0 0.0
        %676 = vmatpush.msra.mxu0 0.0
        %677 = vmatpush.msra.mxu0 0.0
        %678 = vmatpush.msra.mxu0 0.0
        %679 = vmatpush.msra.mxu0 0.0
        %680 = vmatpush.msra.mxu0 0.0
        %681 = vmatpush.msra.mxu0 %v665
        %682 = vmatpush.msra.mxu0 %v644
        %683 = vmatmul.f32.gmra.mxu0 %v652
        %v684 = vpop.f32.mrf.mxu0
        %v685 = vadd.f32 %v648, %v684
        %686 = vmatmul.f32.gmra.mxu0 %v655
        %v687 = vpop.f32.mrf.mxu0
        %v688 = vadd.f32 %v648, %v687
        %689 = vmatmul.f32.gmra.mxu0 %v658
        %v690 = vpop.f32.mrf.mxu0
        %v691 = vadd.f32 %v648, %v690
        %692 = vmatmul.f32.gmra.mxu0 %v661
        %v693 = vpop.f32.mrf.mxu0
        %v694 = vadd.f32 %v648, %v693
        %695 = vdwg.mxu0
        %v696 = vxor.u32 %v685, 2147483648
        %v697 = vxor.u32 %v688, 2147483648
        %v698 = vxor.u32 %v691, 2147483648
        %v699 = vxor.u32 %v694, 2147483648
        %v700 = vmul.f32 %v696, 1.442695
        %v701 = vpow.pop %v700
        %v702 = vmul.f32 %v697, 1.442695
        %v703 = vpow.pop %v702
        %v704 = vmul.f32 %v698, 1.442695
        %v705 = vpow.pop %v704
        %v706 = vmul.f32 %v699, 1.442695
        %v707 = vpow.pop %v706
        %v708 = vadd.f32 %v701, 1.0
        %v709 = vadd.f32 %v703, 1.0
        %v710 = vadd.f32 %v705, 1.0
        %v711 = vadd.f32 %v707, 1.0
        %v712 = vrcp.pop %v708
        %v713 = vmul.f32 %v708, %v712
        %v714 = vsub.f32 1.0, %v713
        %v715 = vmul.f32 %v712, %v714
        %v716 = vadd.f32 %v712, %v715
        %vm717 = vweird.f32 %v708
        %vm718 = vweird.f32 %v712
        %vm719 = vmor %vm717, %vm718
        %v720 = vsel %vm719, %v712, %v716
        %v721 = vand.u32 2147483647, %v708
        %vm722 = vcmp.eq.f32.partialorder %v721, 8.507059e+37
        %v723 = vand.u32 %v708, 2147483648
        %v724 = vor.u32 1.1754944e-38, %v723
        %v725 = vsel %vm722, %v724, %v720
        %v726 = vmul.f32 1.0, %v725
        %v727 = vrcp.pop %v709
        %v728 = vmul.f32 %v709, %v727
        %v729 = vsub.f32 1.0, %v728
        %v730 = vmul.f32 %v727, %v729
        %v731 = vadd.f32 %v727, %v730
        %vm732 = vweird.f32 %v709
        %vm733 = vweird.f32 %v727
        %vm734 = vmor %vm732, %vm733
        %v735 = vsel %vm734, %v727, %v731
        %v736 = vand.u32 2147483647, %v709
        %vm737 = vcmp.eq.f32.partialorder %v736, 8.507059e+37
        %v738 = vand.u32 %v709, 2147483648
        %v739 = vor.u32 1.1754944e-38, %v738
        %v740 = vsel %vm737, %v739, %v735
        %v741 = vmul.f32 1.0, %v740
        %v742 = vrcp.pop %v710
        %v743 = vmul.f32 %v710, %v742
        %v744 = vsub.f32 1.0, %v743
        %v745 = vmul.f32 %v742, %v744
        %v746 = vadd.f32 %v742, %v745
        %vm747 = vweird.f32 %v710
        %vm748 = vweird.f32 %v742
        %vm749 = vmor %vm747, %vm748
        %v750 = vsel %vm749, %v742, %v746
        %v751 = vand.u32 2147483647, %v710
        %vm752 = vcmp.eq.f32.partialorder %v751, 8.507059e+37
        %v753 = vand.u32 %v710, 2147483648
        %v754 = vor.u32 1.1754944e-38, %v753
        %v755 = vsel %vm752, %v754, %v750
        %v756 = vmul.f32 1.0, %v755
        %v757 = vrcp.pop %v711
        %v758 = vmul.f32 %v711, %v757
        %v759 = vsub.f32 1.0, %v758
        %v760 = vmul.f32 %v757, %v759
        %v761 = vadd.f32 %v757, %v760
        %vm762 = vweird.f32 %v711
        %vm763 = vweird.f32 %v757
        %vm764 = vmor %vm762, %vm763
        %v765 = vsel %vm764, %v757, %v761
        %v766 = vand.u32 2147483647, %v711
        %vm767 = vcmp.eq.f32.partialorder %v766, 8.507059e+37
        %v768 = vand.u32 %v711, 2147483648
        %v769 = vor.u32 1.1754944e-38, %v768
        %v770 = vsel %vm767, %v769, %v765
        %v771 = vmul.f32 1.0, %v770
        %v772 = vld [vmem:[%s7] sm:$0xff]
        %v773 = vld [vmem:[%s7 + $0x8] sm:$0xff]
        %v774 = vld [vmem:[%s7 + $0x10] sm:$0xff]
        %v775 = vld [vmem:[%s7 + $0x18] sm:$0xff]
        %v776 = vld [vmem:[%s7 + $0x20] sm:$0xf]
        %v777 = vld [vmem:[%s7 + $0x28] sm:$0xf]
        %v778 = vld [vmem:[%s8] sm:$0x3]
        %v780 = vperm.slane %v778, 0
        %v781 = vperm.slane %v778, 1
        %v785 = vsel %vm522, %v726, 0
        %v788 = vsel %vm522, %v741, 0
        %v791 = vsel %vm522, %v756, 0
        %v794 = vsel %vm522, %v771, 0
        %v797 = vsel %vm535, %v776, 0
        %v800 = vsel %vm535, %v777, 0
        %802 = vmatpush.msra.mxu0 0.0
        %803 = vmatpush.msra.mxu0 0.0
        %804 = vmatpush.msra.mxu0 0.0
        %805 = vmatpush.msra.mxu0 0.0
        %806 = vmatpush.msra.mxu0 0.0
        %807 = vmatpush.msra.mxu0 0.0
        %808 = vmatpush.msra.mxu0 0.0
        %809 = vmatpush.msra.mxu0 0.0
        %810 = vmatpush.msra.mxu0 0.0
        %811 = vmatpush.msra.mxu0 0.0
        %812 = vmatpush.msra.mxu0 0.0
        %813 = vmatpush.msra.mxu0 0.0
        %814 = vmatpush.msra.mxu0 0.0
        %815 = vmatpush.msra.mxu0 %v797
        %816 = vmatpush.msra.mxu0 %v774
        %817 = vmatpush.msra.mxu0 %v772
        %818 = vmatmul.f32.gmra.mxu0 %v785
        %v819 = vpop.f32.mrf.mxu0
        %v820 = vadd.f32 %v780, %v819
        %821 = vmatmul.f32.gmra.mxu0 %v788
        %v822 = vpop.f32.mrf.mxu0
        %v823 = vadd.f32 %v780, %v822
        %824 = vmatmul.f32.gmra.mxu0 %v791
        %v825 = vpop.f32.mrf.mxu0
        %v826 = vadd.f32 %v780, %v825
        %827 = vmatmul.f32.gmra.mxu0 %v794
        %v828 = vpop.f32.mrf.mxu0
        %v829 = vadd.f32 %v780, %v828
        %830 = vdwg.mxu0
        %831 = vmatpush.msra.mxu0 0.0
        %832 = vmatpush.msra.mxu0 0.0
        %833 = vmatpush.msra.mxu0 0.0
        %834 = vmatpush.msra.mxu0 0.0
        %835 = vmatpush.msra.mxu0 0.0
        %836 = vmatpush.msra.mxu0 0.0
        %837 = vmatpush.msra.mxu0 0.0
        %838 = vmatpush.msra.mxu0 0.0
        %839 = vmatpush.msra.mxu0 0.0
        %840 = vmatpush.msra.mxu0 0.0
        %841 = vmatpush.msra.mxu0 0.0
        %842 = vmatpush.msra.mxu0 0.0
        %843 = vmatpush.msra.mxu0 0.0
        %844 = vmatpush.msra.mxu0 %v800
        %845 = vmatpush.msra.mxu0 %v775
        %846 = vmatpush.msra.mxu0 %v773
        %847 = vmatmul.f32.gmra.mxu0 %v785
        %v848 = vpop.f32.mrf.mxu0
        %v849 = vadd.f32 %v781, %v848
        %850 = vmatmul.f32.gmra.mxu0 %v788
        %v851 = vpop.f32.mrf.mxu0
        %v852 = vadd.f32 %v781, %v851
        %853 = vmatmul.f32.gmra.mxu0 %v791
        %v854 = vpop.f32.mrf.mxu0
        %v855 = vadd.f32 %v781, %v854
        %856 = vmatmul.f32.gmra.mxu0 %v794
        %v857 = vpop.f32.mrf.mxu0
        %v858 = vadd.f32 %v781, %v857
        %859 = vdwg.mxu0
        %860 = vst [vmem:[%s328] sm:$0xff] %v820
        %861 = vst [vmem:[%s328 + $0x8] sm:$0xff] %v849
        %862 = vst [vmem:[%s328 + $0x10] sm:$0xff] %v823
        %863 = vst [vmem:[%s328 + $0x18] sm:$0xff] %v852
        %864 = vst [vmem:[%s328 + $0x20] sm:$0xff] %v826
        %865 = vst [vmem:[%s328 + $0x28] sm:$0xff] %v855
        %866 = vst [vmem:[%s328 + $0x30] sm:$0xff] %v829
        %867 = vst [vmem:[%s328 + $0x38] sm:$0xff] %v858
        %s868 = sand.u32 %s225, 1
        %s869 = scalar_lea.sflag [#allocation3], %s868
        %s870 = sand.u32 %s225, 1
        %s871 = smul.addr %s870, 64
        %s872 = scalar_lea.vmem [#allocation2], %s871
        // Predicated region
        $region57: #{tpu_custom_call.1} parent=55 // pred_check
          %p873 = pneg %p235
        $region58: #{tpu_custom_call.1} parent=55 // pred_check_branch
          %875 = sbr.rel (%p873) target = $region60
        $region59: #{tpu_custom_call.1} parent=55 // pred_region
          %s876 = smul.u32 4, %s23
          %878 = vsyncadd %s869, 0
          %s879 = smul.addr %s876, 2
          %s880 = smul.addr %s879, 8
          %s881 = scalar_lea.hbm %s9, %s880
          %s882 = sshll.u32 %s872, 4
          %s883 = int_to_ptr.vmem [resolvable:$true] %s882
          %s884 = sshll.u32 %s881, 4
          %s885 = int_to_ptr.hbm [resolvable:$true] %s884
          %890 = dma.vmem_to_hbm [thread:$0]  %s883, 1024, %s885, %s869, 256, 256, 16
        $region60: #{tpu_custom_call.1} parent=55 // pred_fallthru
          _
      $region56: #{tpu_custom_call.1} parent=5 // pred_fallthru
        _
      %p891 = scmp.le.s32.totalorder 2, %s18
      // Predicated region
      $region61: #{tpu_custom_call.1} parent=5 // pred_check
        %p892 = pneg %p891
      $region62: #{tpu_custom_call.1} parent=5 // pred_check_branch
        %894 = sbr.rel (%p892) target = $region64
      $region63: #{tpu_custom_call.1} parent=5 // pred_region
        %s895 = ssub.s32 %s18, 2
        // Predicated region
        $region65: #{tpu_custom_call.1} parent=63 // pred_check
          %p896 = pneg %p241
        $region66: #{tpu_custom_call.1} parent=63 // pred_check_branch
          %898 = sbr.rel (%p896) target = $region68
        $region67: #{tpu_custom_call.1} parent=63 // pred_region
          %s899 = sand.u32 %s226, 1
          %s900 = scalar_lea.sflag [#allocation3], %s899
          %s901 = sand.u32 %s226, 1
          %s902 = smul.addr %s901, 64
          %s903 = scalar_lea.vmem [#allocation2], %s902
          %905 = dma.done %s900, 1024
        $region68: #{tpu_custom_call.1} parent=63 // pred_fallthru
          _
      $region64: #{tpu_custom_call.1} parent=5 // pred_fallthru
        _
    $region6: #{tpu_custom_call.1} parent=1 // loop_footer
      %s22 = sadd.s32 1, %s18
    $region7: #{tpu_custom_call.1} parent=1 // loop_footer_branch
      %17 = sbr.rel target = $region3
    $region8: #{tpu_custom_call.1} parent=1 // loop_exit
      _
    %906 = vsyncpa [#allocation3], 1
    %s907 = scalar_lea.sflag [#allocation3], 1
    %908 = vsyncpa %s907, 1

</llo_original>
